<compile_context>
chip_gen: v7x
topology: tpu7x:2x2x1
jax: 0.10.0
libtpu: 0.0.40
codegen_flags: <defaults>
</compile_context>

<pallas_src>
import functools

import jax
import jax.numpy as jnp
from jax import lax
from jax.experimental import pallas as pl
from jax.experimental.pallas import tpu as pltpu


def _round_up(a, b):
    return (a + b - 1) // b * b


def _tpu_config():
    """Per-generation (tm, ti, vmem_budget_bytes, multi_core) defaults."""
    try:
        kind = jax.devices()[0].device_kind.lower()
    except Exception:  # pragma: no cover - defensive
        kind = ""
    try:
        vmem_cap = int(pltpu.get_tpu_info().vmem_capacity_bytes)
    except Exception:  # pragma: no cover - defensive
        vmem_cap = (64 << 20) if "v7" in kind else (128 << 20)
    if "v7" in kind:            # 2 TCs, 64 MiB VMEM, ridge ~310 flops/B
        tm, ti, multi_core = 512, 512, True
    elif "v6" in kind:          # 128 MiB VMEM, ridge ~675 flops/B
        tm, ti, multi_core = 1024, 512, False
    else:                       # v5e/v5p/unknown, 128 MiB VMEM, ridge ~240 flops/B
        tm, ti, multi_core = 512, 512, False
    budget = max(vmem_cap - (8 << 20), 24 << 20)  # leave compiler scratch headroom
    return tm, ti, budget, multi_core


def _pick_ti(I, ti_target):
    """Pick an intermediate-dim tile: largest multiple of 128 <= ti_target that
    divides I (I padded up to a 128 multiple if needed).  Tiny I stays whole."""
    if I <= 256:
        return I, I
    I_pad = _round_up(I, 128)
    ti_target = max(128, (ti_target // 128) * 128)
    ti_eff = 128
    for cand in range(min(ti_target, I_pad), 127, -128):
        if I_pad % cand == 0:
            ti_eff = cand
            break
    return ti_eff, I_pad


def _swiglu_mlp_kernel(x_ref, wg_ref, wu_ref, wd_ref, o_ref, acc_ref, *, chunk):
    # x_ref:   [tm, D]      token tile (resident across the I axis)
    # wg_ref:  [ti, D]      gate_proj weight slab (PyTorch [out, in] layout)
    # wu_ref:  [ti, D]      up_proj weight slab
    # wd_ref:  [D, ti]      down_proj weight slab
    # o_ref:   [tm, D]      output tile
    # acc_ref: [tm, D] f32  accumulator over the I (reduction) grid axis
    i_blk = pl.program_id(1)

    @pl.when(i_blk == 0)
    def _init():
        acc_ref[...] = jnp.zeros_like(acc_ref)

    # Native-dtype operands on the MXU, f32 accumulation.  (In production x and
    # the weights are bf16; the cast is a no-op when dtypes already match.)
    x = x_ref[...].astype(wg_ref.dtype)
    ti = wg_ref.shape[0]
    # Contract dim 1 of LHS with dim 1 of RHS: [M,K] x [N,K]^T -> [M,N].
    # Transposed-RHS is a native MXU pattern (no XLU transpose of the slabs).
    dims_t = (((1,), (1,)), ((), ()))

    # Chunk the SwiGLU + down-projection over ti so the f32 gate/up/h
    # intermediates stay small (static offsets -> static slices, no lowering
    # risk, fully unrolled).
    for off in range(0, ti, chunk):
        wg = wg_ref[pl.ds(off, chunk), :]
        wu = wu_ref[pl.ds(off, chunk), :]
        wd = wd_ref[:, pl.ds(off, chunk)]

        gate = lax.dot_general(x, wg, dims_t, preferred_element_type=jnp.float32)
        up = lax.dot_general(x, wu, dims_t, preferred_element_type=jnp.float32)

        # SiLU(gate) * up, f32 math (sigmoid on the EUP); cast back to the
        # weight dtype so the down projection stays on the fast MXU path.
        h = (gate * jax.nn.sigmoid(gate) * up).astype(wd_ref.dtype)

        acc_ref[...] += lax.dot_general(h, wd, dims_t,
                                        preferred_element_type=jnp.float32)

    @pl.when(i_blk == pl.num_programs(1) - 1)
    def _flush():
        o_ref[...] = acc_ref[...].astype(o_ref.dtype)


@functools.partial(jax.jit, static_argnames=("tm", "ti"))
def language_model_mlp(x, wg, wu, wd, *, tm=None, ti=None):
    """SwiGLU MLP forward.

    x: [B, T, D]; wg, wu: [I, D]; wd: [D, I]  (PyTorch nn.Linear layout).
    tm / ti default to per-TPU-generation tile sizes (None = auto).
    """
    B, T, D = x.shape
    I, D_in = wg.shape
    assert D_in == D and wu.shape == (I, D) and wd.shape == (D, I)
    M = B * T

    tm_def, ti_def, vmem_budget, multi_core = _tpu_config()
    tm = tm_def if tm is None else tm
    ti = ti_def if ti is None else ti

    # Row tile: sublane aligned (16 for packed bf16, 8 otherwise); shrink to
    # the (padded) token count for tiny inputs.
    sub = 16 if x.dtype == jnp.bfloat16 else 8
    tm_eff = min(_round_up(tm, sub), _round_up(M, sub))

    # Intermediate-dim tile + padded I, plus the in-kernel sub-chunk width.
    ti_eff, I_pad = _pick_ti(I, ti)
    chunk = ti_eff
    if ti_eff > 512:
        for cand in (512, 384, 256, 128):
            if ti_eff % cand == 0:
                chunk = cand
                break

    x_bytes = jnp.dtype(x.dtype).itemsize
    w_bytes = jnp.dtype(wg.dtype).itemsize

    def _vmem_est(tm_):
        return (4 * tm_ * D * x_bytes            # double-buffered x + out tiles
                + 6 * ti_eff * D * w_bytes       # double-buffered Wg/Wu/Wd slabs
                + 2 * tm_ * D * 4                # f32 accumulator + transient dot result
                + tm_ * chunk * (8 + w_bytes))   # live gate/up (f32) + h intermediates

    # Shrink the row tile if the working set would not fit this chip's VMEM.
    while _vmem_est(tm_eff) + (4 << 20) > vmem_budget and tm_eff > max(sub, 128):
        tm_eff = max(sub, _round_up(tm_eff // 2, sub))

    # On v7x make sure the "parallel" token axis has >= 2 tiles so the grid
    # actually shards across both TensorCores.
    if multi_core:
        while tm_eff > sub and _round_up(M, tm_eff) // tm_eff < 2:
            tm_eff = max(sub, _round_up(tm_eff // 2, sub))

    M_pad = _round_up(M, tm_eff)

    x2d = x.reshape(M, D)
    if M_pad != M:
        x2d = jnp.pad(x2d, ((0, M_pad - M), (0, 0)))
    if I_pad != I:
        # Zero-padded intermediate channels contribute exactly 0 to the output
        # (gate = 0 -> silu(0) = 0 -> h = 0).
        wg = jnp.pad(wg, ((0, I_pad - I), (0, 0)))
        wu = jnp.pad(wu, ((0, I_pad - I), (0, 0)))
        wd = jnp.pad(wd, ((0, 0), (0, I_pad - I)))

    vmem_limit = int(min(max(_vmem_est(tm_eff) + (4 << 20), 32 << 20), vmem_budget))

    kernel = functools.partial(_swiglu_mlp_kernel, chunk=chunk)

    out2d = pl.pallas_call(
        kernel,
        out_shape=jax.ShapeDtypeStruct((M_pad, D), x.dtype),
        grid_spec=pltpu.PrefetchScalarGridSpec(
            num_scalar_prefetch=0,
            grid=(M_pad // tm_eff, I_pad // ti_eff),   # reduction (I) axis last
            in_specs=[
                pl.BlockSpec((tm_eff, D), lambda i, j: (i, 0)),   # x
                pl.BlockSpec((ti_eff, D), lambda i, j: (j, 0)),   # Wg
                pl.BlockSpec((ti_eff, D), lambda i, j: (j, 0)),   # Wu
                pl.BlockSpec((D, ti_eff), lambda i, j: (0, j)),   # Wd
            ],
            out_specs=pl.BlockSpec((tm_eff, D), lambda i, j: (i, 0)),
            scratch_shapes=[pltpu.VMEM((tm_eff, D), jnp.float32)],
        ),
        compiler_params=pltpu.CompilerParams(
            dimension_semantics=("parallel", "arbitrary"),
            vmem_limit_bytes=vmem_limit,
        ),
    )(x2d, wg, wu, wd)

    return out2d[:M].reshape(B, T, D)


def _reference(x, wg, wu, wd):
    gate = jax.nn.silu(jnp.einsum("btd,id->bti", x, wg))
    up = jnp.einsum("btd,id->bti", x, wu)
    return jnp.einsum("bti,di->btd", gate * up, wd)


if __name__ == "__main__":
    tol = dict(atol=5e-3, rtol=5e-3)

    # --- Test 1: tiny shapes consistent with the module (lm_hidden_dim=32,
    #     lm_inter_dim=64).  Single grid step, full-dim (unaligned) blocks.
    B, T, D, I = 2, 8, 32, 64
    kx, kg, ku, kd = jax.random.split(jax.random.PRNGKey(0), 4)
    x = jax.random.normal(kx, (B, T, D), dtype=jnp.float32)
    wg = jax.random.normal(kg, (I, D), dtype=jnp.float32) * (1.0 / D) ** 0.5
    wu = jax.random.normal(ku, (I, D), dtype=jnp.float32) * (1.0 / D) ** 0.5
    wd = jax.random.normal(kd, (D, I), dtype=jnp.float32) * (1.0 / I) ** 0.5

    out = jax.block_until_ready(language_model_mlp(x, wg, wu, wd))
    ref = _reference(x, wg, wu, wd)
    assert out.shape == (B, T, D)
    assert jnp.allclose(out, ref, **tol), "test1 mismatch vs reference"

    # --- Test 2: exercises token tiling + token-axis padding, I-axis padding
    #     (320 -> 384) and I-axis accumulation (grid = (4, 3)).
    B2, T2, D2, I2 = 2, 30, 128, 320
    k2 = jax.random.split(jax.random.PRNGKey(1), 4)
    x2 = jax.random.normal(k2[0], (B2, T2, D2), dtype=jnp.float32)
    wg2 = jax.random.normal(k2[1], (I2, D2), dtype=jnp.float32) * (1.0 / D2) ** 0.5
    wu2 = jax.random.normal(k2[2], (I2, D2), dtype=jnp.float32) * (1.0 / D2) ** 0.5
    wd2 = jax.random.normal(k2[3], (D2, I2), dtype=jnp.float32) * (1.0 / I2) ** 0.5

    out2 = jax.block_until_ready(
        language_model_mlp(x2, wg2, wu2, wd2, tm=16, ti=128))
    ref2 = _reference(x2, wg2, wu2, wd2)
    assert out2.shape == (B2, T2, D2)
    assert jnp.allclose(out2, ref2, **tol), "test2 mismatch vs reference"

    # Same inputs with auto (per-generation) tiling.
    out2b = jax.block_until_ready(language_model_mlp(x2, wg2, wu2, wd2))
    assert jnp.allclose(out2b, ref2, **tol), "test2 (auto tiles) mismatch"

    # --- Test 3: exercises the in-kernel ti sub-chunking (ti_eff=1024 ->
    #     two 512-wide SwiGLU chunks per grid step).
    B3, T3, D3, I3 = 1, 16, 128, 1024
    k3 = jax.random.split(jax.random.PRNGKey(2), 4)
    x3 = jax.random.normal(k3[0], (B3, T3, D3), dtype=jnp.float32)
    wg3 = jax.random.normal(k3[1], (I3, D3), dtype=jnp.float32) * (1.0 / D3) ** 0.5
    wu3 = jax.random.normal(k3[2], (I3, D3), dtype=jnp.float32) * (1.0 / D3) ** 0.5
    wd3 = jax.random.normal(k3[3], (D3, I3), dtype=jnp.float32) * (1.0 / I3) ** 0.5

    out3 = jax.block_until_ready(language_model_mlp(x3, wg3, wu3, wd3, ti=1024))
    ref3 = _reference(x3, wg3, wu3, wd3)
    assert out3.shape == (B3, T3, D3)
    assert jnp.allclose(out3, ref3, **tol), "test3 mismatch vs reference"

    print("KERNEL_OK")
</pallas_src>

<mosaic_0001>
module attributes {stable_mosaic.version = 11 : i64} {
  func.func @_swiglu_mlp_kernel(%arg0: i32, %arg1: i32, %arg2: memref<16x32xf32, #tpu.memory_space<vmem>>, %arg3: memref<64x32xf32, #tpu.memory_space<vmem>>, %arg4: memref<64x32xf32, #tpu.memory_space<vmem>>, %arg5: memref<32x64xf32, #tpu.memory_space<vmem>>, %arg6: memref<16x32xf32, #tpu.memory_space<vmem>>, %arg7: memref<16x32xf32, #tpu.memory_space<vmem>>) attributes {dimension_semantics = [#tpu.dimension_semantics<parallel>, #tpu.dimension_semantics<arbitrary>], iteration_bounds = array<i64: 1, 1>, scalar_prefetch = 0 : i64, scratch_operands = 1 : i64, tpu.core_type = #tpu.core_type<tc>, window_params = [{transform_indices = @transform_0, window_bounds = array<i64: 16, 32>}, {transform_indices = @transform_1, window_bounds = array<i64: 64, 32>}, {transform_indices = @transform_2, window_bounds = array<i64: 64, 32>}, {transform_indices = @transform_3, window_bounds = array<i64: 32, 64>}, {transform_indices = @transform_4, window_bounds = array<i64: 16, 32>}]} {
    %c0_i32 = arith.constant 0 : i32
    %0 = arith.cmpi eq, %arg1, %c0_i32 : i32
    %1 = arith.extui %0 : i1 to i32
    %c0_i32_0 = arith.constant 0 : i32
    %2 = arith.cmpi ne, %1, %c0_i32_0 : i32
    scf.if %2 {
      %cst_17 = arith.constant 0.000000e+00 : f32
      %23 = vector.broadcast %cst_17 : f32 to vector<16x32xf32>
      %c0_18 = arith.constant 0 : index
      %c0_19 = arith.constant 0 : index
      %24 = vector.load %arg7[%c0_18, %c0_19] : memref<16x32xf32, #tpu.memory_space<vmem>>, vector<16x32xf32>
      tpu.vector_store %arg7[%c0_18, %c0_19], %23 {strides = array<i32>} : memref<16x32xf32, #tpu.memory_space<vmem>>, vector<16x32xf32>,
    } else {
    }
    %c0 = arith.constant 0 : index
    %c0_1 = arith.constant 0 : index
    %3 = vector.load %arg2[%c0, %c0_1] : memref<16x32xf32, #tpu.memory_space<vmem>>, vector<16x32xf32>
    %c0_2 = arith.constant 0 : index
    %c0_3 = arith.constant 0 : index
    %4 = vector.load %arg3[%c0_2, %c0_3] : memref<64x32xf32, #tpu.memory_space<vmem>>, vector<64x32xf32>
    %c0_4 = arith.constant 0 : index
    %c0_5 = arith.constant 0 : index
    %5 = vector.load %arg4[%c0_4, %c0_5] : memref<64x32xf32, #tpu.memory_space<vmem>>, vector<64x32xf32>
    %c0_6 = arith.constant 0 : index
    %c0_7 = arith.constant 0 : index
    %6 = vector.load %arg5[%c0_6, %c0_7] : memref<32x64xf32, #tpu.memory_space<vmem>>, vector<32x64xf32>
    %cst = arith.constant dense<0.000000e+00> : vector<16x64xf32>
    %7 = tpu.matmul %3, %4, %cst {dimension_numbers = #tpu.dot_dimension_numbers<[1], [1], [0], [0], [0, 0, 1, 0], [], []>} : vector<16x32xf32>, vector<64x32xf32>, vector<16x64xf32> -> vector<16x64xf32>
    %cst_8 = arith.constant dense<0.000000e+00> : vector<16x64xf32>
    %8 = tpu.matmul %3, %5, %cst_8 {dimension_numbers = #tpu.dot_dimension_numbers<[1], [1], [0], [0], [0, 0, 1, 0], [], []>} : vector<16x32xf32>, vector<64x32xf32>, vector<16x64xf32> -> vector<16x64xf32>
    %9 = arith.negf %7 : vector<16x64xf32>
    %10 = math.exp %9 : vector<16x64xf32>
    %cst_9 = arith.constant 1.000000e+00 : f32
    %11 = vector.broadcast %cst_9 : f32 to vector<16x64xf32>
    %12 = arith.addf %11, %10 : vector<16x64xf32>
    %13 = arith.divf %11, %12 : vector<16x64xf32>
    %14 = arith.mulf %7, %13 : vector<16x64xf32>
    %15 = arith.mulf %14, %8 : vector<16x64xf32>
    %c0_10 = arith.constant 0 : index
    %c0_11 = arith.constant 0 : index
    %16 = vector.load %arg7[%c0_10, %c0_11] : memref<16x32xf32, #tpu.memory_space<vmem>>, vector<16x32xf32>
    %cst_12 = arith.constant dense<0.000000e+00> : vector<16x32xf32>
    %17 = tpu.matmul %15, %6, %cst_12 {dimension_numbers = #tpu.dot_dimension_numbers<[1], [1], [0], [0], [0, 0, 1, 0], [], []>} : vector<16x64xf32>, vector<32x64xf32>, vector<16x32xf32> -> vector<16x32xf32>
    %18 = arith.addf %16, %17 : vector<16x32xf32>
    %c0_13 = arith.constant 0 : index
    %c0_14 = arith.constant 0 : index
    %19 = vector.load %arg7[%c0_13, %c0_14] : memref<16x32xf32, #tpu.memory_space<vmem>>, vector<16x32xf32>
    tpu.vector_store %arg7[%c0_13, %c0_14], %18 {strides = array<i32>} : memref<16x32xf32, #tpu.memory_space<vmem>>, vector<16x32xf32>,
    %c0_i32_15 = arith.constant 0 : i32
    %20 = arith.cmpi eq, %arg1, %c0_i32_15 : i32
    %21 = arith.extui %20 : i1 to i32
    %c0_i32_16 = arith.constant 0 : i32
    %22 = arith.cmpi ne, %21, %c0_i32_16 : i32
    scf.if %22 {
      %c0_17 = arith.constant 0 : index
      %c0_18 = arith.constant 0 : index
      %23 = vector.load %arg7[%c0_17, %c0_18] : memref<16x32xf32, #tpu.memory_space<vmem>>, vector<16x32xf32>
      %c0_19 = arith.constant 0 : index
      %c0_20 = arith.constant 0 : index
      %24 = vector.load %arg6[%c0_19, %c0_20] : memref<16x32xf32, #tpu.memory_space<vmem>>, vector<16x32xf32>
      tpu.vector_store %arg6[%c0_19, %c0_20], %23 {strides = array<i32>} : memref<16x32xf32, #tpu.memory_space<vmem>>, vector<16x32xf32>,
    } else {
    }
    return
  }
  func.func @transform_0(%arg0: i32, %arg1: i32) -> (i32, i32) {
    %c0_i32 = arith.constant 0 : i32
    %c0_i32_0 = arith.constant 0 : i32
    return %arg0, %c0_i32 : i32, i32
  }
  func.func @transform_1(%arg0: i32, %arg1: i32) -> (i32, i32) {
    %c0_i32 = arith.constant 0 : i32
    %c0_i32_0 = arith.constant 0 : i32
    return %arg1, %c0_i32 : i32, i32
  }
  func.func @transform_2(%arg0: i32, %arg1: i32) -> (i32, i32) {
    %c0_i32 = arith.constant 0 : i32
    %c0_i32_0 = arith.constant 0 : i32
    return %arg1, %c0_i32 : i32, i32
  }
  func.func @transform_3(%arg0: i32, %arg1: i32) -> (i32, i32) {
    %c0_i32 = arith.constant 0 : i32
    %c0_i32_0 = arith.constant 0 : i32
    return %c0_i32, %arg1 : i32, i32
  }
  func.func @transform_4(%arg0: i32, %arg1: i32) -> (i32, i32) {
    %c0_i32 = arith.constant 0 : i32
    %c0_i32_0 = arith.constant 0 : i32
    return %arg0, %c0_i32 : i32, i32
  }
}

</mosaic_0001>

<llo_original>
// kernel: language_model_mlp.1
$region0: #{language_model_mlp.1}
  #allocation0 [shape = 'u32[]', space=smem, size = 0x4, offset = 0x4, fixed_abs, tag = 'smem constant byte address 0x4 - core index']
  #allocation1 [shape = 'u32[144,128]{1,0:T(1,128)}', space=vmem, size = 0x12000, scoped, tag = 'internal scratch']
  #allocation2 [shape = 'f32[16,32]{1,0:T(8,128)}', space=vmem, size = 0x2000, scoped, tag = 'scratch operand']
  %s0 = inlined_call_operand.vmem [shape: f32[16,32], index: 0, kind: input, shape index: {}]
  %s1 = inlined_call_operand.vmem [shape: f32[64,32], index: 1, kind: input, shape index: {}]
  %s2 = inlined_call_operand.vmem [shape: f32[64,32], index: 2, kind: input, shape index: {}]
  %s3 = inlined_call_operand.vmem [shape: f32[32,64], index: 3, kind: input, shape index: {}]
  %s4 = inlined_call_operand.hbm [shape: f32[16,32], index: 4, kind: output, shape index: {}]
  %s5 = sld [smem:[#allocation0]]
  $region34: #{language_model_mlp.1} parent=0
    _
  %s7 = ssub.s32 1, %s5
  %s8 = scalar_select 0, %s7, %s5
  $region1: #{language_model_mlp.1} parent=0
    #allocation3 [shape = 'u8[8192]{0}', space=vmem, size = 0x2000, scoped, tag = 'output window, operand 0, single buffered']
    #allocation4 [shape = 's32[1]{0}', space=sflag, size = 0x4, scoped, tag = 'scoped memory for language_model_mlp.1']
    %9 = vsyncpa [#allocation4], 0
    // Predicated region
    $region2: #{language_model_mlp.1} parent=1 // pred_check
      _
    $region3: #{language_model_mlp.1} parent=1 // pred_check_branch
      %11 = sbr.rel (0) target = $region5
    $region4: #{language_model_mlp.1} parent=1 // pred_region
      _
    $region5: #{language_model_mlp.1} parent=1 // pred_fallthru
      _
    // Predicated region
    $region6: #{language_model_mlp.1} parent=1 // pred_check
      _
    $region7: #{language_model_mlp.1} parent=1 // pred_check_branch
      %13 = sbr.rel (0) target = $region9
    $region8: #{language_model_mlp.1} parent=1 // pred_region
      _
    $region9: #{language_model_mlp.1} parent=1 // pred_fallthru
      _
    // Predicated region
    $region10: #{language_model_mlp.1} parent=1 // pred_check
      _
    $region11: #{language_model_mlp.1} parent=1 // pred_check_branch
      %15 = sbr.rel (0) target = $region13
    $region12: #{language_model_mlp.1} parent=1 // pred_region
      _
    $region13: #{language_model_mlp.1} parent=1 // pred_fallthru
      _
    // Predicated region
    $region14: #{language_model_mlp.1} parent=1 // pred_check
      _
    $region15: #{language_model_mlp.1} parent=1 // pred_check_branch
      %17 = sbr.rel (0) target = $region17
    $region16: #{language_model_mlp.1} parent=1 // pred_region
      _
    $region17: #{language_model_mlp.1} parent=1 // pred_fallthru
      _
    %p18 = scmp.eq.s32.totalorder 0, 0
    // Predicated region
    $region18: #{language_model_mlp.1} parent=1 // pred_check
      %p19 = pneg %p18
    $region19: #{language_model_mlp.1} parent=1 // pred_check_branch
      %21 = sbr.rel (%p19) target = $region21
    $region20: #{language_model_mlp.1} parent=1 // pred_region
      %vm22 = vcmask 261120
      %23 = vst.msk [vmem:[#allocation2] sm:$0xff] %vm22, 0.0
      %24 = vst.msk [vmem:[#allocation2 + $0x8] sm:$0xff] %vm22, 0.0
    $region21: #{language_model_mlp.1} parent=1 // pred_fallthru
      _
    %v25 = vld [vmem:[%s0] sm:$0xff]
    %v26 = vld [vmem:[%s0 + $0x8] sm:$0xff]
    %v27 = vld [vmem:[%s1] sm:$0xff]
    %v28 = vld [vmem:[%s1 + $0x8] sm:$0xff]
    %v29 = vld [vmem:[%s1 + $0x10] sm:$0xff]
    %v30 = vld [vmem:[%s1 + $0x18] sm:$0xff]
    %v31 = vld [vmem:[%s1 + $0x20] sm:$0xff]
    %v32 = vld [vmem:[%s1 + $0x28] sm:$0xff]
    %v33 = vld [vmem:[%s1 + $0x30] sm:$0xff]
    %v34 = vld [vmem:[%s1 + $0x38] sm:$0xff]
    %v35 = vld [vmem:[%s2] sm:$0xff]
    %v36 = vld [vmem:[%s2 + $0x8] sm:$0xff]
    %v37 = vld [vmem:[%s2 + $0x10] sm:$0xff]
    %v38 = vld [vmem:[%s2 + $0x18] sm:$0xff]
    %v39 = vld [vmem:[%s2 + $0x20] sm:$0xff]
    %v40 = vld [vmem:[%s2 + $0x28] sm:$0xff]
    %v41 = vld [vmem:[%s2 + $0x30] sm:$0xff]
    %v42 = vld [vmem:[%s2 + $0x38] sm:$0xff]
    %v43 = vld [vmem:[%s3] sm:$0xff]
    %v44 = vld [vmem:[%s3 + $0x8] sm:$0xff]
    %v45 = vld [vmem:[%s3 + $0x10] sm:$0xff]
    %v46 = vld [vmem:[%s3 + $0x18] sm:$0xff]
    %vm47 = vcmask 261120
    %v49 = vsel %vm47, %v25, 0
    %v52 = vsel %vm47, %v26, 0
    %v55 = vsel %vm47, %v27, 0
    %v58 = vsel %vm47, %v28, 0
    %v61 = vsel %vm47, %v29, 0
    %v64 = vsel %vm47, %v30, 0
    %v67 = vsel %vm47, %v31, 0
    %v70 = vsel %vm47, %v32, 0
    %v73 = vsel %vm47, %v33, 0
    %v76 = vsel %vm47, %v34, 0
    %78 = vmatprep.subr.mxu0 0.0
    %79 = vmatpush1.xpose.msra.mxu0 %v55
    %80 = vmatprep.subr.mxu0 0.0
    %81 = vmatpush1.xpose.msra.mxu0 %v58
    %82 = vmatprep.subr.mxu0 0.0
    %83 = vmatpush1.xpose.msra.mxu0 %v61
    %84 = vmatprep.subr.mxu0 0.0
    %85 = vmatpush1.xpose.msra.mxu0 %v64
    %86 = vmatprep.subr.mxu0 0.0
    %87 = vmatpush1.xpose.msra.mxu0 %v67
    %88 = vmatprep.subr.mxu0 0.0
    %89 = vmatpush1.xpose.msra.mxu0 %v70
    %90 = vmatprep.subr.mxu0 0.0
    %91 = vmatpush1.xpose.msra.mxu0 %v73
    %92 = vmatprep.subr.mxu0 0.0
    %93 = vmatpush1.xpose.msra.mxu0 %v76
    %94 = vmatprep.subr.mxu0 0.0
    %95 = vmatpush1.xpose.msra.mxu0 0.0
    %96 = vmatprep.subr.mxu0 0.0
    %97 = vmatpush1.xpose.msra.mxu0 0.0
    %98 = vmatprep.subr.mxu0 0.0
    %99 = vmatpush1.xpose.msra.mxu0 0.0
    %100 = vmatprep.subr.mxu0 0.0
    %101 = vmatpush1.xpose.msra.mxu0 0.0
    %102 = vmatprep.subr.mxu0 0.0
    %103 = vmatpush1.xpose.msra.mxu0 0.0
    %104 = vmatprep.subr.mxu0 0.0
    %105 = vmatpush1.xpose.msra.mxu0 0.0
    %106 = vmatprep.subr.mxu0 0.0
    %107 = vmatpush1.xpose.msra.mxu0 0.0
    %108 = vmatprep.subr.mxu0 0.0
    %109 = vmatpush1.xpose.msra.mxu0 0.0
    %110 = vmatprep.subr.mxu0 0.0
    %111 = vmatpush1.xpose.msra.mxu0 0.0
    %112 = vmatprep.subr.mxu0 0.0
    %113 = vmatpush1.xpose.msra.mxu0 0.0
    %114 = vmatprep.subr.mxu0 0.0
    %115 = vmatpush1.xpose.msra.mxu0 0.0
    %116 = vmatprep.subr.mxu0 0.0
    %117 = vmatpush1.xpose.msra.mxu0 0.0
    %118 = vmatprep.subr.mxu0 0.0
    %119 = vmatpush1.xpose.msra.mxu0 0.0
    %120 = vmatprep.subr.mxu0 0.0
    %121 = vmatpush1.xpose.msra.mxu0 0.0
    %122 = vmatprep.subr.mxu0 0.0
    %123 = vmatpush1.xpose.msra.mxu0 0.0
    %124 = vmatprep.subr.mxu0 0.0
    %125 = vmatpush1.xpose.msra.mxu0 0.0
    %126 = vmatprep.subr.mxu0 0.0
    %127 = vmatpush1.xpose.msra.mxu0 0.0
    %128 = vmatprep.subr.mxu0 0.0
    %129 = vmatpush1.xpose.msra.mxu0 0.0
    %130 = vmatprep.subr.mxu0 0.0
    %131 = vmatpush1.xpose.msra.mxu0 0.0
    %132 = vmatprep.subr.mxu0 0.0
    %133 = vmatpush1.xpose.msra.mxu0 0.0
    %134 = vmatprep.subr.mxu0 0.0
    %135 = vmatpush1.xpose.msra.mxu0 0.0
    %136 = vmatprep.subr.mxu0 0.0
    %137 = vmatpush1.xpose.msra.mxu0 0.0
    %138 = vmatprep.subr.mxu0 0.0
    %139 = vmatpush1.xpose.msra.mxu0 0.0
    %140 = vmatprep.subr.mxu0 0.0
    %141 = vmatpush1.xpose.msra.mxu0 0.0
    %142 = vmatprep.mubr.f32.mxu0 0.0
    %143 = vmatmul.mubr.f32.gmra.mrb[0].mxu0 %v49
    %v144 = vpop.f32.mrb[0].mxu0
    %v145 = vadd.f32 0.0, %v144
    %v146 = vpop.f32.mrb[0].mxu0
    %147 = vmatprep.mubr.f32.mxu0 0.0
    %148 = vmatmul.mubr.f32.gmra.mrb[0].mxu0 %v52
    %v149 = vpop.f32.mrb[0].mxu0
    %v150 = vadd.f32 0.0, %v149
    %v151 = vpop.f32.mrb[0].mxu0
    %152 = vdwg.mxu0
    %v154 = vsel %vm47, %v35, 0
    %v157 = vsel %vm47, %v36, 0
    %v160 = vsel %vm47, %v37, 0
    %v163 = vsel %vm47, %v38, 0
    %v166 = vsel %vm47, %v39, 0
    %v169 = vsel %vm47, %v40, 0
    %v172 = vsel %vm47, %v41, 0
    %v175 = vsel %vm47, %v42, 0
    %177 = vmatprep.subr.mxu0 0.0
    %178 = vmatpush1.xpose.msra.mxu0 %v154
    %179 = vmatprep.subr.mxu0 0.0
    %180 = vmatpush1.xpose.msra.mxu0 %v157
    %181 = vmatprep.subr.mxu0 0.0
    %182 = vmatpush1.xpose.msra.mxu0 %v160
    %183 = vmatprep.subr.mxu0 0.0
    %184 = vmatpush1.xpose.msra.mxu0 %v163
    %185 = vmatprep.subr.mxu0 0.0
    %186 = vmatpush1.xpose.msra.mxu0 %v166
    %187 = vmatprep.subr.mxu0 0.0
    %188 = vmatpush1.xpose.msra.mxu0 %v169
    %189 = vmatprep.subr.mxu0 0.0
    %190 = vmatpush1.xpose.msra.mxu0 %v172
    %191 = vmatprep.subr.mxu0 0.0
    %192 = vmatpush1.xpose.msra.mxu0 %v175
    %193 = vmatprep.subr.mxu0 0.0
    %194 = vmatpush1.xpose.msra.mxu0 0.0
    %195 = vmatprep.subr.mxu0 0.0
    %196 = vmatpush1.xpose.msra.mxu0 0.0
    %197 = vmatprep.subr.mxu0 0.0
    %198 = vmatpush1.xpose.msra.mxu0 0.0
    %199 = vmatprep.subr.mxu0 0.0
    %200 = vmatpush1.xpose.msra.mxu0 0.0
    %201 = vmatprep.subr.mxu0 0.0
    %202 = vmatpush1.xpose.msra.mxu0 0.0
    %203 = vmatprep.subr.mxu0 0.0
    %204 = vmatpush1.xpose.msra.mxu0 0.0
    %205 = vmatprep.subr.mxu0 0.0
    %206 = vmatpush1.xpose.msra.mxu0 0.0
    %207 = vmatprep.subr.mxu0 0.0
    %208 = vmatpush1.xpose.msra.mxu0 0.0
    %209 = vmatprep.subr.mxu0 0.0
    %210 = vmatpush1.xpose.msra.mxu0 0.0
    %211 = vmatprep.subr.mxu0 0.0
    %212 = vmatpush1.xpose.msra.mxu0 0.0
    %213 = vmatprep.subr.mxu0 0.0
    %214 = vmatpush1.xpose.msra.mxu0 0.0
    %215 = vmatprep.subr.mxu0 0.0
    %216 = vmatpush1.xpose.msra.mxu0 0.0
    %217 = vmatprep.subr.mxu0 0.0
    %218 = vmatpush1.xpose.msra.mxu0 0.0
    %219 = vmatprep.subr.mxu0 0.0
    %220 = vmatpush1.xpose.msra.mxu0 0.0
    %221 = vmatprep.subr.mxu0 0.0
    %222 = vmatpush1.xpose.msra.mxu0 0.0
    %223 = vmatprep.subr.mxu0 0.0
    %224 = vmatpush1.xpose.msra.mxu0 0.0
    %225 = vmatprep.subr.mxu0 0.0
    %226 = vmatpush1.xpose.msra.mxu0 0.0
    %227 = vmatprep.subr.mxu0 0.0
    %228 = vmatpush1.xpose.msra.mxu0 0.0
    %229 = vmatprep.subr.mxu0 0.0
    %230 = vmatpush1.xpose.msra.mxu0 0.0
    %231 = vmatprep.subr.mxu0 0.0
    %232 = vmatpush1.xpose.msra.mxu0 0.0
    %233 = vmatprep.subr.mxu0 0.0
    %234 = vmatpush1.xpose.msra.mxu0 0.0
    %235 = vmatprep.subr.mxu0 0.0
    %236 = vmatpush1.xpose.msra.mxu0 0.0
    %237 = vmatprep.subr.mxu0 0.0
    %238 = vmatpush1.xpose.msra.mxu0 0.0
    %239 = vmatprep.subr.mxu0 0.0
    %240 = vmatpush1.xpose.msra.mxu0 0.0
    %241 = vmatprep.mubr.f32.mxu0 0.0
    %242 = vmatmul.mubr.f32.gmra.mrb[0].mxu0 %v49
    %v243 = vpop.f32.mrb[0].mxu0
    %v244 = vadd.f32 0.0, %v243
    %v245 = vpop.f32.mrb[0].mxu0
    %246 = vmatprep.mubr.f32.mxu0 0.0
    %247 = vmatmul.mubr.f32.gmra.mrb[0].mxu0 %v52
    %v248 = vpop.f32.mrb[0].mxu0
    %v249 = vadd.f32 0.0, %v248
    %v250 = vpop.f32.mrb[0].mxu0
    %251 = vdwg.mxu0
    %v252 = vxor.u32 %v145, 2147483648
    %v253 = vxor.u32 %v150, 2147483648
    %v254 = vmul.f32 %v252, 1.442695
    %v255 = vpow.pop %v254
    %v256 = vmul.f32 %v253, 1.442695
    %v257 = vpow.pop %v256
    %v258 = vadd.f32 %v255, 1.0
    %v259 = vadd.f32 %v257, 1.0
    %v260 = vrcp.pop %v258
    %v261 = vmul.f32 1.0, %v260
    %v262 = vrcp.pop %v259
    %v263 = vmul.f32 1.0, %v262
    %v264 = vmul.f32 %v145, %v261
    %v265 = vmul.f32 %v150, %v263
    %v266 = vmul.f32 %v264, %v244
    %v267 = vmul.f32 %v265, %v249
    %v268 = vld [vmem:[#allocation2] sm:$0xff]
    %v269 = vld [vmem:[#allocation2 + $0x8] sm:$0xff]
    %vm270 = vcmask 523264
    %v272 = vsel %vm270, %v266, 0
    %v275 = vsel %vm270, %v267, 0
    %v278 = vsel %vm270, %v43, 0
    %v281 = vsel %vm270, %v44, 0
    %v284 = vsel %vm270, %v45, 0
    %v287 = vsel %vm270, %v46, 0
    %289 = vmatprep.subr.mxu0 0.0
    %290 = vmatpush1.xpose.msra.mxu0 %v278
    %291 = vmatprep.subr.mxu0 0.0
    %292 = vmatpush1.xpose.msra.mxu0 %v281
    %293 = vmatprep.subr.mxu0 0.0
    %294 = vmatpush1.xpose.msra.mxu0 %v284
    %295 = vmatprep.subr.mxu0 0.0
    %296 = vmatpush1.xpose.msra.mxu0 %v287
    %297 = vmatprep.subr.mxu0 0.0
    %298 = vmatpush1.xpose.msra.mxu0 0.0
    %299 = vmatprep.subr.mxu0 0.0
    %300 = vmatpush1.xpose.msra.mxu0 0.0
    %301 = vmatprep.subr.mxu0 0.0
    %302 = vmatpush1.xpose.msra.mxu0 0.0
    %303 = vmatprep.subr.mxu0 0.0
    %304 = vmatpush1.xpose.msra.mxu0 0.0
    %305 = vmatprep.subr.mxu0 0.0
    %306 = vmatpush1.xpose.msra.mxu0 0.0
    %307 = vmatprep.subr.mxu0 0.0
    %308 = vmatpush1.xpose.msra.mxu0 0.0
    %309 = vmatprep.subr.mxu0 0.0
    %310 = vmatpush1.xpose.msra.mxu0 0.0
    %311 = vmatprep.subr.mxu0 0.0
    %312 = vmatpush1.xpose.msra.mxu0 0.0
    %313 = vmatprep.subr.mxu0 0.0
    %314 = vmatpush1.xpose.msra.mxu0 0.0
    %315 = vmatprep.subr.mxu0 0.0
    %316 = vmatpush1.xpose.msra.mxu0 0.0
    %317 = vmatprep.subr.mxu0 0.0
    %318 = vmatpush1.xpose.msra.mxu0 0.0
    %319 = vmatprep.subr.mxu0 0.0
    %320 = vmatpush1.xpose.msra.mxu0 0.0
    %321 = vmatprep.subr.mxu0 0.0
    %322 = vmatpush1.xpose.msra.mxu0 0.0
    %323 = vmatprep.subr.mxu0 0.0
    %324 = vmatpush1.xpose.msra.mxu0 0.0
    %325 = vmatprep.subr.mxu0 0.0
    %326 = vmatpush1.xpose.msra.mxu0 0.0
    %327 = vmatprep.subr.mxu0 0.0
    %328 = vmatpush1.xpose.msra.mxu0 0.0
    %329 = vmatprep.subr.mxu0 0.0
    %330 = vmatpush1.xpose.msra.mxu0 0.0
    %331 = vmatprep.subr.mxu0 0.0
    %332 = vmatpush1.xpose.msra.mxu0 0.0
    %333 = vmatprep.subr.mxu0 0.0
    %334 = vmatpush1.xpose.msra.mxu0 0.0
    %335 = vmatprep.subr.mxu0 0.0
    %336 = vmatpush1.xpose.msra.mxu0 0.0
    %337 = vmatprep.subr.mxu0 0.0
    %338 = vmatpush1.xpose.msra.mxu0 0.0
    %339 = vmatprep.subr.mxu0 0.0
    %340 = vmatpush1.xpose.msra.mxu0 0.0
    %341 = vmatprep.subr.mxu0 0.0
    %342 = vmatpush1.xpose.msra.mxu0 0.0
    %343 = vmatprep.subr.mxu0 0.0
    %344 = vmatpush1.xpose.msra.mxu0 0.0
    %345 = vmatprep.subr.mxu0 0.0
    %346 = vmatpush1.xpose.msra.mxu0 0.0
    %347 = vmatprep.subr.mxu0 0.0
    %348 = vmatpush1.xpose.msra.mxu0 0.0
    %349 = vmatprep.subr.mxu0 0.0
    %350 = vmatpush1.xpose.msra.mxu0 0.0
    %351 = vmatprep.subr.mxu0 0.0
    %352 = vmatpush1.xpose.msra.mxu0 0.0
    %353 = vmatprep.mubr.f32.mxu0 0.0
    %354 = vmatmul.mubr.f32.gmra.mrb[0].mxu0 %v272
    %v355 = vpop.f32.mrb[0].mxu0
    %v356 = vadd.f32 0.0, %v355
    %v357 = vpop.f32.mrb[0].mxu0
    %358 = vmatprep.mubr.f32.mxu0 0.0
    %359 = vmatmul.mubr.f32.gmra.mrb[0].mxu0 %v275
    %v360 = vpop.f32.mrb[0].mxu0
    %v361 = vadd.f32 0.0, %v360
    %v362 = vpop.f32.mrb[0].mxu0
    %363 = vdwg.mxu0
    %v364 = vadd.f32 %v268, %v356
    %v365 = vadd.f32 %v269, %v361
    %366 = vst.msk [vmem:[#allocation2] sm:$0xff] %vm47, %v364
    %367 = vst.msk [vmem:[#allocation2 + $0x8] sm:$0xff] %vm47, %v365
    // Predicated region
    $region22: #{language_model_mlp.1} parent=1 // pred_check
      %p368 = pneg %p18
    $region23: #{language_model_mlp.1} parent=1 // pred_check_branch
      %370 = sbr.rel (%p368) target = $region25
    $region24: #{language_model_mlp.1} parent=1 // pred_region
      %v371 = vld [vmem:[#allocation2] sm:$0xff]
      %v372 = vld [vmem:[#allocation2 + $0x8] sm:$0xff]
      %373 = vst.msk [vmem:[#allocation3] sm:$0xff] %vm47, %v371
      %374 = vst.msk [vmem:[#allocation3 + $0x8] sm:$0xff] %vm47, %v372
    $region25: #{language_model_mlp.1} parent=1 // pred_fallthru
      _
    // Predicated region
    $region26: #{language_model_mlp.1} parent=1 // pred_check
      _
    $region27: #{language_model_mlp.1} parent=1 // pred_check_branch
      %376 = sbr.rel (0) target = $region29
    $region28: #{language_model_mlp.1} parent=1 // pred_region
      %s378 = ssub.s32 256, 256
      %379 = vsyncadd [#allocation4], %s378
      %s380 = sshll.u32 [#allocation3], 4
      %s381 = int_to_ptr.vmem [resolvable:$true] %s380
      %386 = dma.vmem_to_hbm [thread:$0]  %s381, 256, %s4, [#allocation4], 128, 128, 8
    $region29: #{language_model_mlp.1} parent=1 // pred_fallthru
      _
    // Predicated region
    $region30: #{language_model_mlp.1} parent=1 // pred_check
      _
    $region31: #{language_model_mlp.1} parent=1 // pred_check_branch
      %388 = sbr.rel (0) target = $region33
    $region32: #{language_model_mlp.1} parent=1 // pred_region
      %389 = dma.done [#allocation4], 256
    $region33: #{language_model_mlp.1} parent=1 // pred_fallthru
      _
    %390 = vsyncpa [#allocation4], 1

</llo_original>
